<compile_context>
chip_gen: v6e
topology: v6e:2x2x1
jax: 0.10.0
libtpu: 0.0.40
codegen_flags: <defaults>
</compile_context>

<pallas_src>
import functools

import jax
import jax.numpy as jnp
from jax import lax
from jax.experimental import pallas as pl
from jax.experimental.pallas import tpu as pltpu

_LANE = 128


def _cdiv(a, b):
    return (a + b - 1) // b


def _color_loss_sum_kernel(x_ref, o_ref, *, n_j, tile_l, true_l, ragged_start,
                           needs_mask):
    """Accumulate per-row (= per batch*channel) spatial sums.

    x_ref: (R, tile_l) block of the row-flattened input (R = B*C rows).
    o_ref: (R, 1) f32 partial sums for this parallel segment (segment axis
           squeezed out by the out BlockSpec); resident across the j axis.
    """
    p = pl.program_id(0)          # parallel spatial segment
    j = pl.program_id(1)          # reduction tile within the segment

    @pl.when(j == 0)
    def _init():
        o_ref[...] = jnp.zeros_like(o_ref)

    def _accum(valid):
        x = x_ref[...]                                        # (R, tile_l)
        if valid is not None:
            # Ragged / phantom tile: zero lanes past the true spatial extent
            # (valid <= 0 for a phantom tile -> contributes exactly zero).
            lane = lax.broadcasted_iota(jnp.int32, x.shape, 1)
            x = jnp.where(lane < valid, x, jnp.zeros((), x.dtype))
        # f32 accumulation regardless of input dtype; lowers to lane-group VPU
        # adds + one small per-row reduce, hidden under the tile DMA.
        o_ref[...] += jnp.sum(x, axis=-1, keepdims=True, dtype=jnp.float32)

    if needs_mask:
        t = p * n_j + j                                       # global tile index

        @pl.when(t < ragged_start)        # full tiles: no mask work at all
        def _full():
            _accum(None)

        @pl.when(t >= ragged_start)       # ragged last tile / phantom tiles
        def _ragged():
            _accum(true_l - t * tile_l)
    else:
        _accum(None)


def color_loss(x, *, target_block_bytes=4 << 20):
    """x: (B, 3, H, W). Returns (B, 1, 1, 1) == ColorLoss().forward(x)."""
    B, C, H, W = x.shape
    assert C == 3, "ColorLoss expects 3 (R, G, B) channels"
    L = H * W
    R = B * C
    itemsize = jnp.dtype(x.dtype).itemsize

    # Row-flattened, lane-dense view: batch*channel lives in the sublane axis,
    # all spatial pixels in the lane axis.  Contiguous reshape -> free in XLA.
    x_rows = x.reshape(R, L)

    # ---- spatial tiling ----
    # Budget the block by the *padded* row count (Mosaic pads the sublane dim
    # to 8 rows for 32-bit, 16 for 16-bit, 32 for 8-bit dtypes).
    sub = max(8, 32 // itemsize)
    r_pad = _cdiv(R, sub) * sub
    max_tl = max(_LANE, (target_block_bytes // (r_pad * itemsize)) // _LANE * _LANE)
    # TODO(synk): for extreme batch sizes (R * 128 * itemsize > VMEM budget) add a
    # row-block grid axis; unnecessary for detection-sized batches.

    if L <= _LANE:
        # Lane axis can't be split; one full-row tile (block dims == array dims).
        n_p, n_j, tile_l, n_t = 1, 1, L, 1
    else:
        # Always >= 2 spatial tiles so the "parallel" segment axis has extent 2
        # (keeps both v7x TensorCores busy even for B == 1); harmless on 1-TC chips.
        n_t = max(2, _cdiv(L, max_tl))
        tile_l = _cdiv(_cdiv(L, n_t), _LANE) * _LANE          # lane multiple
        n_t = _cdiv(L, tile_l)
        n_p = 2
        n_j = _cdiv(n_t, n_p)

    total_tiles = n_p * n_j
    needs_mask = total_tiles * tile_l != L
    ragged_start = L // tile_l            # first tile index that needs lane masking
    has_phantom = total_tiles > n_t       # at most one; clamped + fully masked

    if has_phantom:
        def x_map(p, j):
            return (0, jnp.minimum(p * n_j + j, n_t - 1))
    else:
        def x_map(p, j):
            return (0, p * n_j + j)

    kernel = functools.partial(
        _color_loss_sum_kernel,
        n_j=n_j, tile_l=tile_l, true_l=L,
        ragged_start=ragged_start, needs_mask=needs_mask)

    partial_sums = pl.pallas_call(
        kernel,
        out_shape=jax.ShapeDtypeStruct((n_p, R, 1), jnp.float32),
        grid=(n_p, n_j),                                     # reduction axis last
        in_specs=[pl.BlockSpec((R, tile_l), x_map)],
        out_specs=pl.BlockSpec((None, R, 1), lambda p, j: (p, 0, 0)),
        compiler_params=pltpu.CompilerParams(
            dimension_semantics=("parallel", "arbitrary"),
        ),
        cost_estimate=pl.CostEstimate(
            flops=R * L + 16 * B,
            transcendentals=B,
            bytes_accessed=R * L * itemsize + n_p * R * 4,
        ),
    )(x_rows)

    # Tiny epilogue (~8 flops per image) in plain XLA, per review.
    m = partial_sums[..., 0].sum(axis=0).reshape(B, C) * (1.0 / float(L))
    d = jnp.square(m - 0.5)                                  # Dr, Dg, Db
    k = jnp.sqrt(jnp.sum(d * d, axis=-1, keepdims=True))     # (B, 1)
    return k.reshape(B, 1, 1, 1).astype(x.dtype)


def _color_loss_ref(x):
    """Pure-JAX reference matching the PyTorch forward exactly."""
    mean_rgb = jnp.mean(x, axis=(2, 3), keepdims=True)       # (B, 3, 1, 1)
    mr = mean_rgb[:, 0:1]
    mg = mean_rgb[:, 1:2]
    mb = mean_rgb[:, 2:3]
    Dr = (mr - 0.5) ** 2
    Dg = (mg - 0.5) ** 2
    Db = (mb - 0.5) ** 2
    return jnp.sqrt(Dr ** 2 + Dg ** 2 + Db ** 2)             # (B, 1, 1, 1)


if __name__ == "__main__":
    # 1) Small RGB batch: exercises the 2-way parallel spatial split, no masking.
    x = jax.random.uniform(jax.random.PRNGKey(0), (2, 3, 16, 16), dtype=jnp.float32)
    out = jax.block_until_ready(color_loss(x))
    ref = _color_loss_ref(x)
    assert out.shape == (2, 1, 1, 1), out.shape
    assert jnp.allclose(out, ref, atol=1e-6, rtol=1e-5), (out, ref)

    # 2) Multi-tile reduction with a ragged last tile (tiny block target).
    x2 = jax.random.uniform(jax.random.PRNGKey(1), (2, 3, 40, 50), dtype=jnp.float32)
    out2 = jax.block_until_ready(color_loss(x2, target_block_bytes=16 * 1024))
    ref2 = _color_loss_ref(x2)
    assert out2.shape == (2, 1, 1, 1), out2.shape
    assert jnp.allclose(out2, ref2, atol=1e-6, rtol=1e-5), (out2, ref2)

    # 3) B == 1 with an odd tile count -> clamped, fully-masked phantom tile.
    x3 = jax.random.uniform(jax.random.PRNGKey(2), (1, 3, 32, 48), dtype=jnp.float32)
    out3 = jax.block_until_ready(color_loss(x3, target_block_bytes=16 * 1024))
    ref3 = _color_loss_ref(x3)
    assert out3.shape == (1, 1, 1, 1), out3.shape
    assert jnp.allclose(out3, ref3, atol=1e-6, rtol=1e-5), (out3, ref3)

    print("KERNEL_OK")
</pallas_src>

<mosaic_0001>
module attributes {stable_mosaic.version = 11 : i64} {
  func.func @_color_loss_sum_kernel(%arg0: i32, %arg1: i32, %arg2: memref<6x128xf32, #tpu.memory_space<vmem>>, %arg3: memref<1x6x1xf32, #tpu.memory_space<vmem>>) attributes {dimension_semantics = [#tpu.dimension_semantics<parallel>, #tpu.dimension_semantics<arbitrary>], iteration_bounds = array<i64: 2, 1>, scalar_prefetch = 0 : i64, scratch_operands = 0 : i64, tpu.core_type = #tpu.core_type<tc>, window_params = [{transform_indices = @transform_0, window_bounds = array<i64: 6, 128>}, {transform_indices = @transform_1, window_bounds = array<i64: 1, 6, 1>}]} {
    %c0_i32 = arith.constant 0 : i32
    %0 = arith.cmpi eq, %arg1, %c0_i32 : i32
    %1 = arith.extui %0 : i1 to i32
    %c0_i32_0 = arith.constant 0 : i32
    %2 = arith.cmpi ne, %1, %c0_i32_0 : i32
    scf.if %2 {
      %cst_8 = arith.constant 0.000000e+00 : f32
      %12 = vector.broadcast %cst_8 : f32 to vector<6x1xf32>
      %c0_9 = arith.constant 0 : index
      %c0_10 = arith.constant 0 : index
      %c0_11 = arith.constant 0 : index
      %13 = vector.load %arg3[%c0_9, %c0_10, %c0_11] : memref<1x6x1xf32, #tpu.memory_space<vmem>>, vector<1x6x1xf32>
      %14 = vector.shape_cast %13 : vector<1x6x1xf32> to vector<6x1xf32>
      %15 = vector.shape_cast %12 : vector<6x1xf32> to vector<1x6x1xf32>
      tpu.vector_store %arg3[%c0_9, %c0_10, %c0_11], %15 {strides = array<i32>} : memref<1x6x1xf32, #tpu.memory_space<vmem>>, vector<1x6x1xf32>,
    } else {
    }
    %c0 = arith.constant 0 : index
    %c0_1 = arith.constant 0 : index
    %3 = vector.load %arg2[%c0, %c0_1] : memref<6x128xf32, #tpu.memory_space<vmem>>, vector<6x128xf32>
    %c0_2 = arith.constant 0 : index
    %c0_3 = arith.constant 0 : index
    %c0_4 = arith.constant 0 : index
    %4 = vector.load %arg3[%c0_2, %c0_3, %c0_4] : memref<1x6x1xf32, #tpu.memory_space<vmem>>, vector<1x6x1xf32>
    %5 = vector.shape_cast %4 : vector<1x6x1xf32> to vector<6x1xf32>
    %cst = arith.constant dense<0.000000e+00> : vector<6xf32>
    %6 = vector.multi_reduction <add>, %3, %cst [1] : vector<6x128xf32> to vector<6xf32>
    %7 = vector.shape_cast %6 : vector<6xf32> to vector<6x1xf32>
    %8 = arith.addf %5, %7 : vector<6x1xf32>
    %c0_5 = arith.constant 0 : index
    %c0_6 = arith.constant 0 : index
    %c0_7 = arith.constant 0 : index
    %9 = vector.load %arg3[%c0_5, %c0_6, %c0_7] : memref<1x6x1xf32, #tpu.memory_space<vmem>>, vector<1x6x1xf32>
    %10 = vector.shape_cast %9 : vector<1x6x1xf32> to vector<6x1xf32>
    %11 = vector.shape_cast %8 : vector<6x1xf32> to vector<1x6x1xf32>
    tpu.vector_store %arg3[%c0_5, %c0_6, %c0_7], %11 {strides = array<i32>} : memref<1x6x1xf32, #tpu.memory_space<vmem>>, vector<1x6x1xf32>,
    return
  }
  func.func @transform_0(%arg0: i32, %arg1: i32) -> (i32, i32) {
    %c1_i32 = arith.constant 1 : i32
    %0 = arith.muli %arg0, %c1_i32 : i32
    %1 = arith.addi %0, %arg1 : i32
    %c0_i32 = arith.constant 0 : i32
    %c0_i32_0 = arith.constant 0 : i32
    return %c0_i32, %1 : i32, i32
  }
  func.func @transform_1(%arg0: i32, %arg1: i32) -> (i32, i32, i32) {
    %c0_i32 = arith.constant 0 : i32
    %c0_i32_0 = arith.constant 0 : i32
    %c0_i32_1 = arith.constant 0 : i32
    return %arg0, %c0_i32, %c0_i32_0 : i32, i32, i32
  }
}

</mosaic_0001>

<llo_original>
// kernel: tpu_custom_call.1
$region0: #{tpu_custom_call.1}
  #allocation0 [shape = 'u32[]', space=smem, size = 0x4, offset = 0x4, fixed_abs, tag = 'smem constant byte address 0x4 - core index']
  #allocation1 [shape = 'u32[144,128]{1,0:T(1,128)}', space=vmem, size = 0x12000, scoped, tag = 'internal scratch']
  %s0 = inlined_call_operand.hbm [shape: f32[6,256], index: 0, kind: input, shape index: {}]
  %s1 = inlined_call_operand.vmem [shape: f32[2,6,1], index: 1, kind: output, shape index: {}]
  %s2 = sld [smem:[#allocation0]]
  $region45: #{tpu_custom_call.1} parent=0
    _
  %s4 = ssub.s32 1, %s2
  %s5 = scalar_select 0, %s4, %s2
  $region1: #{tpu_custom_call.1} parent=0
    #allocation2 [shape = 'u8[8192]{0}', space=vmem, size = 0x2000, scoped, tag = 'input window, operand 0']
    #allocation3 [shape = 's32[2]{0}', space=sflag, size = 0x8, scoped, tag = 'scoped memory for tpu_custom_call.1']
    %6 = vsyncpa [#allocation3], 0
    %s7 = scalar_lea.sflag [#allocation3], 1
    %8 = vsyncpa %s7, 0
    loop: start=0, step=1, limit=4
    $region2: #{tpu_custom_call.1} parent=1 // loop_pre_header
      _
    $region3: #{tpu_custom_call.1} parent=1 // loop_header
      %s10 = sphi 0, %s14
      %p11 = scmp.ge.s32.totalorder %s10, 4
      %s17 = sphi 0, %s29
      %s18 = sphi 0, %s25
      %s19 = sphi 0, %s17
      %s20 = sphi 0, %s18
      %s21 = sphi 0, %s19
      %s22 = sphi 0, %s20
      %s34 = sphi 0, %s36
      %s37 = sphi 0, %s34
      %s38 = sphi 0, %s37
      %s54 = sphi 0, %s38
      %s60 = sphi 0, %s62
      %s63 = sphi 0, %s60
      %s64 = sphi 0, %s63
      %s80 = sphi 0, %s64
    $region4: #{tpu_custom_call.1} parent=1 // loop_header_branch
      %13 = sbr.rel (%p11) target = $region8
    $region5: #{tpu_custom_call.1} parent=1 // loop_body
      %s15 = ssub.s32 %s10, 1
      %s16 = ssub.s32 %s10, 2
      %s23 = sadd.s32 1, %s18
      %p24 = scmp.ge.s32.totalorder %s23, 1
      %s25 = scalar_select %p24, 0, %s23
      %s26 = sadd.s32 1, %s17
      %s27 = scalar_select %p24, %s26, %s17
      %p28 = scmp.ge.s32.totalorder %s27, 2
      %s29 = scalar_select %p28, 0, %s27
      %s30 = sadd.s32 %s17, %s18
      %s31 = sadd.s32 %s29, %s25
      %s32 = ssub.s32 %s30, %s31
      %p33 = scmp.eq.s32.totalorder %s32, 0
      %s35 = sadd.s32 %s34, 1
      %s36 = scalar_select %p33, %s34, %s35
      %p39 = pneg %p33
      %p40 = scmp.eq.s32.totalorder %s10, 1
      %p41 = por %p39, %p40
      %p42 = scmp.ne.s32.totalorder %s34, %s37
      %p43 = scmp.eq.s32.totalorder %s10, 0
      %p44 = por %p42, %p43
      %p45 = scmp.ne.s32.totalorder %s34, %s37
      %p46 = scmp.eq.s32.totalorder %s15, 1
      %p47 = por %p45, %p46
      %p48 = scmp.ne.s32.totalorder %s37, %s38
      %p49 = scmp.eq.s32.totalorder %s15, 0
      %p50 = por %p48, %p49
      %p51 = scmp.ne.s32.totalorder %s37, %s38
      %p52 = scmp.eq.s32.totalorder %s16, 1
      %p53 = por %p51, %p52
      %p55 = scmp.ne.s32.totalorder %s38, %s54
      %p56 = scmp.eq.s32.totalorder %s16, 0
      %p57 = por %p55, %p56
      %s58 = ssub.s32 %s17, %s29
      %p59 = scmp.eq.s32.totalorder %s58, 0
      %s61 = sadd.s32 %s60, 1
      %s62 = scalar_select %p59, %s60, %s61
      %p65 = pneg %p59
      %p66 = scmp.eq.s32.totalorder %s10, 1
      %p67 = por %p65, %p66
      %p68 = scmp.ne.s32.totalorder %s60, %s63
      %p69 = scmp.eq.s32.totalorder %s10, 0
      %p70 = por %p68, %p69
      %p71 = scmp.ne.s32.totalorder %s60, %s63
      %p72 = scmp.eq.s32.totalorder %s15, 1
      %p73 = por %p71, %p72
      %p74 = scmp.ne.s32.totalorder %s63, %s64
      %p75 = scmp.eq.s32.totalorder %s15, 0
      %p76 = por %p74, %p75
      %p77 = scmp.ne.s32.totalorder %s63, %s64
      %p78 = scmp.eq.s32.totalorder %s16, 1
      %p79 = por %p77, %p78
      %p81 = scmp.ne.s32.totalorder %s64, %s80
      %p82 = scmp.eq.s32.totalorder %s16, 0
      %p83 = por %p81, %p82
      %p84 = scmp.le.s32.totalorder 1, %s10
      %p85 = scmp.lt.s32.totalorder %s10, 3
      %p86 = pnand %p84, %p85
      %p87 = pneg %p86
      // Predicated region
      $region9: #{tpu_custom_call.1} parent=5 // pred_check
        _
      $region10: #{tpu_custom_call.1} parent=5 // pred_check_branch
        %89 = sbr.rel (%p86) target = $region12
      $region11: #{tpu_custom_call.1} parent=5 // pred_region
        %s90 = ssub.s32 %s10, 1
      $region12: #{tpu_custom_call.1} parent=5 // pred_fallthru
        _
      %p91 = scmp.lt.s32.totalorder %s10, 2
      // Predicated region
      $region13: #{tpu_custom_call.1} parent=5 // pred_check
        %p92 = pneg %p91
      $region14: #{tpu_custom_call.1} parent=5 // pred_check_branch
        %94 = sbr.rel (%p92) target = $region16
      $region15: #{tpu_custom_call.1} parent=5 // pred_region
        // Predicated region
        $region17: #{tpu_custom_call.1} parent=15 // pred_check
          %p95 = pneg %p44
        $region18: #{tpu_custom_call.1} parent=15 // pred_check_branch
          %97 = sbr.rel (%p95) target = $region20
        $region19: #{tpu_custom_call.1} parent=15 // pred_region
          %s98 = sand.u32 %s34, 1
          %s99 = scalar_lea.sflag [#allocation3], %s98
          %s100 = sand.u32 %s34, 1
          %s101 = smul.addr %s100, 8
          %s102 = scalar_lea.vmem [#allocation2], %s101
          %s103 = sadd.s32 %s17, %s18
          %s105 = ssub.s32 128, 128
          %106 = vsyncadd %s99, %s105
          %s107 = smul.addr %s103, 128
          %s108 = scalar_lea.hbm %s0, %s107
          %s110 = sshll.u32 %s102, 4
          %s111 = int_to_ptr.vmem [resolvable:$true] %s110
          %113 = dma.hbm_to_vmem [thread:$0]  %s108, 128, %s111, %s99
        $region20: #{tpu_custom_call.1} parent=15 // pred_fallthru
          _
      $region16: #{tpu_custom_call.1} parent=5 // pred_fallthru
        _
      %p114 = scmp.le.s32.totalorder 1, %s10
      %p115 = scmp.lt.s32.totalorder %s10, 3
      %p116 = pnand %p114, %p115
      %p117 = pneg %p116
      // Predicated region
      $region21: #{tpu_custom_call.1} parent=5 // pred_check
        _
      $region22: #{tpu_custom_call.1} parent=5 // pred_check_branch
        %119 = sbr.rel (%p116) target = $region24
      $region23: #{tpu_custom_call.1} parent=5 // pred_region
        %s120 = ssub.s32 %s10, 1
        %s121 = sand.u32 %s37, 1
        %s122 = scalar_lea.sflag [#allocation3], %s121
        %s123 = sand.u32 %s37, 1
        %s124 = smul.addr %s123, 8
        %s125 = scalar_lea.vmem [#allocation2], %s124
        // Predicated region
        $region25: #{tpu_custom_call.1} parent=23 // pred_check
          %p126 = pneg %p50
        $region26: #{tpu_custom_call.1} parent=23 // pred_check_branch
          %128 = sbr.rel (%p126) target = $region28
        $region27: #{tpu_custom_call.1} parent=23 // pred_region
          %129 = dma.done %s122, 128
        $region28: #{tpu_custom_call.1} parent=23 // pred_fallthru
          _
        %s130 = sand.u32 %s37, 1
        %s131 = scalar_lea.sflag [#allocation3], %s130
        %s132 = sand.u32 %s37, 1
        %s133 = smul.addr %s132, 8
        %s134 = scalar_lea.vmem [#allocation2], %s133
        %p135 = pneg %p50
        %p136 = pneg %p47
        %p137 = pneg %p76
        %p138 = pneg %p73
        %p139 = scmp.lt.s32.totalorder %s19, 1
        %s140 = scalar_select %p139, %s19, 1
        %s141 = smul.addr %s140, 8
        %s142 = scalar_lea.vmem %s1, %s141
        %s143 = sadd.s32 %s19, %s20
        %p144 = scmp.lt.s32.totalorder %s19, 1
        %s145 = scalar_select %p144, %s19, 1
        %s146 = smul.addr %s145, 8
        %s147 = scalar_lea.vmem %s1, %s146
        %p148 = scmp.eq.s32.totalorder %s20, 0
        // Predicated region
        $region29: #{tpu_custom_call.1} parent=23 // pred_check
          %p149 = pneg %p148
        $region30: #{tpu_custom_call.1} parent=23 // pred_check_branch
          %151 = sbr.rel (%p149) target = $region32
        $region31: #{tpu_custom_call.1} parent=23 // pred_region
          %vm152 = vcmask 5120
          %153 = vst.msk [vmem:[%s147] sm:$0x3f] %vm152, 0.0
        $region32: #{tpu_custom_call.1} parent=23 // pred_fallthru
          _
        %v154 = vld [vmem:[%s125] sm:$0x3f]
        %v155 = vld [vmem:[%s147] sm:$0x3f]
        %vm156 = vcmask 1045504
        %v157 = vsel %vm156, %v154, 0.0
        %158 = vadd.xlane.f32.xlu0 %v157
        %v159 = vpop.xlane.xlu0 %158
        %v160 = vadd.f32 %v155, %v159
        %vm161 = vcmask 5120
        %162 = vst.msk [vmem:[%s147] sm:$0x3f] %vm161, %v160
        %p163 = scmp.lt.s32.totalorder %s19, 1
        %s164 = scalar_select %p163, %s19, 1
        %s165 = smul.addr %s164, 8
        %s166 = scalar_lea.vmem %s1, %s165
        // Predicated region
        $region33: #{tpu_custom_call.1} parent=23 // pred_check
          %p167 = pneg %p73
        $region34: #{tpu_custom_call.1} parent=23 // pred_check_branch
          %169 = sbr.rel (%p167) target = $region36
        $region35: #{tpu_custom_call.1} parent=23 // pred_region
          _
        $region36: #{tpu_custom_call.1} parent=23 // pred_fallthru
          _
      $region24: #{tpu_custom_call.1} parent=5 // pred_fallthru
        _
      %p170 = scmp.le.s32.totalorder 2, %s10
      // Predicated region
      $region37: #{tpu_custom_call.1} parent=5 // pred_check
        %p171 = pneg %p170
      $region38: #{tpu_custom_call.1} parent=5 // pred_check_branch
        %173 = sbr.rel (%p171) target = $region40
      $region39: #{tpu_custom_call.1} parent=5 // pred_region
        %s174 = ssub.s32 %s10, 2
        // Predicated region
        $region41: #{tpu_custom_call.1} parent=39 // pred_check
          %p175 = pneg %p79
        $region42: #{tpu_custom_call.1} parent=39 // pred_check_branch
          %177 = sbr.rel (%p175) target = $region44
        $region43: #{tpu_custom_call.1} parent=39 // pred_region
          %p178 = scmp.lt.s32.totalorder %s21, 1
          %s179 = scalar_select %p178, %s21, 1
          %s180 = smul.addr %s179, 8
          %s181 = scalar_lea.vmem %s1, %s180
        $region44: #{tpu_custom_call.1} parent=39 // pred_fallthru
          _
      $region40: #{tpu_custom_call.1} parent=5 // pred_fallthru
        _
    $region6: #{tpu_custom_call.1} parent=1 // loop_footer
      %s14 = sadd.s32 1, %s10
    $region7: #{tpu_custom_call.1} parent=1 // loop_footer_branch
      %9 = sbr.rel target = $region3
    $region8: #{tpu_custom_call.1} parent=1 // loop_exit
      _
    %182 = vsyncpa [#allocation3], 1
    %s183 = scalar_lea.sflag [#allocation3], 1
    %184 = vsyncpa %s183, 1

</llo_original>
